<compile_context>
chip_gen: v7x
topology: tpu7x:2x2x1
jax: 0.10.0
libtpu: 0.0.40
codegen_flags: <defaults>
</compile_context>

<pallas_src>
import functools

import jax
import jax.numpy as jnp
from jax.experimental import pallas as pl
from jax.experimental.pallas import tpu as pltpu


def _fused_mlp_kernel(*refs, num_hidden):
    """refs = (x, W0, b0, ..., W_{H-1}, b_{H-1}, W_out, b_out, out)."""
    x_ref = refs[0]
    o_ref = refs[-1]

    h = x_ref[...]
    # Hidden layers: Linear -> relu.  Dropout is identity at inference.
    # TODO(synk): a training-mode port would need an in-kernel PRNG dropout
    # mask (pltpu.prng_seed / pltpu.prng_random_bits); not emitted here.
    for li in range(num_hidden):
        W = refs[1 + 2 * li][...]
        b = refs[2 + 2 * li][...]            # (1, out) broadcasts over batch
        h = jnp.dot(h, W, preferred_element_type=jnp.float32) + b
        h = jnp.maximum(h, 0.0)

    # Output layer: Linear(last_hidden, 1), no activation.
    W = refs[1 + 2 * num_hidden][...]
    b = refs[2 + 2 * num_hidden][...]
    y = jnp.dot(h, W, preferred_element_type=jnp.float32) + b
    o_ref[...] = y.astype(o_ref.dtype)


def multilayer_fc_forward(params, x, *, batch_tile=64):
    """Fused forward pass.

    params: list of (W[in, out], b[1, out]) — hidden layers then output layer.
    x:      [B, in_feat] activations (features on the lane axis).
    """
    B, in_feat = x.shape
    num_hidden = len(params) - 1
    out_dim = params[-1][0].shape[1]  # == 1

    # Batch tile: must evenly divide B and be sublane-aligned (or equal B).
    TB = min(batch_tile, B)
    if B % TB != 0:
        TB = B
    assert (TB % 8 == 0) or (TB == B)

    flat_params = []
    in_specs = [pl.BlockSpec((TB, in_feat), lambda i: (i, 0))]
    for (W, b) in params:
        n_in, n_out = W.shape
        flat_params += [W, b]
        # Constant index_map -> weights/bias stay resident in VMEM across
        # all batch grid steps (loaded once, reused).
        in_specs += [
            pl.BlockSpec((n_in, n_out), lambda i: (0, 0)),
            pl.BlockSpec((1, n_out), lambda i: (0, 0)),
        ]

    kernel = functools.partial(_fused_mlp_kernel, num_hidden=num_hidden)
    return pl.pallas_call(
        kernel,
        out_shape=jax.ShapeDtypeStruct((B, out_dim), x.dtype),
        grid=(B // TB,),
        in_specs=in_specs,
        out_specs=pl.BlockSpec((TB, out_dim), lambda i: (i, 0)),
        compiler_params=pltpu.CompilerParams(
            # Batch steps are independent -> shard across TCs on megacore.
            dimension_semantics=("parallel",)),
    )(x, *flat_params)


def init_multilayer_fc(key, in_feat, layers, dtype=jnp.float32):
    """Deterministic params mimicking nn.Linear's default init.

    Returns list of (W[in, out], b[1, out]) for hidden layers + the final
    output layer (out_features = 1).  Weights are stored pre-transposed as
    [in, out] so the kernel computes y = x @ W + b directly on the MXU.
    """
    sizes = [in_feat] + list(layers)
    params = []
    ks = jax.random.split(key, 2 * len(sizes))
    for li, (n_in, n_out) in enumerate(zip(sizes, sizes[1:])):
        bound = 1.0 / jnp.sqrt(float(n_in))
        kw, kb = ks[2 * li], ks[2 * li + 1]
        W = jax.random.uniform(kw, (n_in, n_out), dtype, -bound, bound)
        b = jax.random.uniform(kb, (1, n_out), dtype, -bound, bound)
        params.append((W, b))
    # Output layer: Linear(layers[-1], 1)
    n_in = sizes[-1]
    bound = 1.0 / jnp.sqrt(float(n_in))
    kw, kb = ks[-2], ks[-1]
    W = jax.random.uniform(kw, (n_in, 1), dtype, -bound, bound)
    b = jax.random.uniform(kb, (1, 1), dtype, -bound, bound)
    params.append((W, b))
    return params


if __name__ == "__main__":
    key = jax.random.PRNGKey(0)
    kx, kp = jax.random.split(key)

    batch = 128          # tiled as 2 grid steps of TB=64
    in_feat = 16
    layers = [32, 24]

    x = jax.random.normal(kx, (batch, in_feat), dtype=jnp.float32)
    params = init_multilayer_fc(kp, in_feat, layers, dtype=jnp.float32)

    y = multilayer_fc_forward(params, x, batch_tile=64)
    y = jax.block_until_ready(y)

    # Pure-JAX reference check.
    ref = x
    for (W, b) in params[:-1]:
        ref = jnp.maximum(ref @ W + b, 0.0)
    W, b = params[-1]
    ref = ref @ W + b

    assert y.shape == (batch, 1)
    assert jnp.allclose(y, ref, atol=1e-4, rtol=1e-4), (
        float(jnp.max(jnp.abs(y - ref))))

    print("KERNEL_OK")
</pallas_src>

<mosaic_0001>
module attributes {stable_mosaic.version = 11 : i64} {
  func.func @_fused_mlp_kernel(%arg0: i32, %arg1: memref<64x16xf32, #tpu.memory_space<vmem>>, %arg2: memref<16x32xf32, #tpu.memory_space<vmem>>, %arg3: memref<1x32xf32, #tpu.memory_space<vmem>>, %arg4: memref<32x24xf32, #tpu.memory_space<vmem>>, %arg5: memref<1x24xf32, #tpu.memory_space<vmem>>, %arg6: memref<24x1xf32, #tpu.memory_space<vmem>>, %arg7: memref<1x1xf32, #tpu.memory_space<vmem>>, %arg8: memref<64x1xf32, #tpu.memory_space<vmem>>) attributes {dimension_semantics = [#tpu.dimension_semantics<parallel>], iteration_bounds = array<i64: 2>, scalar_prefetch = 0 : i64, scratch_operands = 0 : i64, tpu.core_type = #tpu.core_type<tc>, window_params = [{transform_indices = @transform_0, window_bounds = array<i64: 64, 16>}, {pipeline_mode = #tpu.pipeline_mode<synchronous>, transform_indices = @transform_1, window_bounds = array<i64: 16, 32>}, {pipeline_mode = #tpu.pipeline_mode<synchronous>, transform_indices = @transform_2, window_bounds = array<i64: 1, 32>}, {pipeline_mode = #tpu.pipeline_mode<synchronous>, transform_indices = @transform_3, window_bounds = array<i64: 32, 24>}, {pipeline_mode = #tpu.pipeline_mode<synchronous>, transform_indices = @transform_4, window_bounds = array<i64: 1, 24>}, {pipeline_mode = #tpu.pipeline_mode<synchronous>, transform_indices = @transform_5, window_bounds = array<i64: 24, 1>}, {pipeline_mode = #tpu.pipeline_mode<synchronous>, transform_indices = @transform_6, window_bounds = array<i64: 1, 1>}, {transform_indices = @transform_7, window_bounds = array<i64: 64, 1>}]} {
    %c0 = arith.constant 0 : index
    %c0_0 = arith.constant 0 : index
    %0 = vector.load %arg1[%c0, %c0_0] : memref<64x16xf32, #tpu.memory_space<vmem>>, vector<64x16xf32>
    %c0_1 = arith.constant 0 : index
    %c0_2 = arith.constant 0 : index
    %1 = vector.load %arg2[%c0_1, %c0_2] : memref<16x32xf32, #tpu.memory_space<vmem>>, vector<16x32xf32>
    %c0_3 = arith.constant 0 : index
    %c0_4 = arith.constant 0 : index
    %2 = vector.load %arg3[%c0_3, %c0_4] : memref<1x32xf32, #tpu.memory_space<vmem>>, vector<1x32xf32>
    %cst = arith.constant dense<0.000000e+00> : vector<64x32xf32>
    %3 = tpu.matmul %0, %1, %cst {dimension_numbers = #tpu.dot_dimension_numbers<[1], [0], [0], [1], [0, 0, 1, 1], [], []>} : vector<64x16xf32>, vector<16x32xf32>, vector<64x32xf32> -> vector<64x32xf32>
    %4 = vector.broadcast %2 : vector<1x32xf32> to vector<64x32xf32>
    %5 = arith.addf %3, %4 : vector<64x32xf32>
    %cst_5 = arith.constant 0.000000e+00 : f32
    %6 = vector.broadcast %cst_5 : f32 to vector<64x32xf32>
    %7 = arith.maximumf %5, %6 : vector<64x32xf32>
    %c0_6 = arith.constant 0 : index
    %c0_7 = arith.constant 0 : index
    %8 = vector.load %arg4[%c0_6, %c0_7] : memref<32x24xf32, #tpu.memory_space<vmem>>, vector<32x24xf32>
    %c0_8 = arith.constant 0 : index
    %c0_9 = arith.constant 0 : index
    %9 = vector.load %arg5[%c0_8, %c0_9] : memref<1x24xf32, #tpu.memory_space<vmem>>, vector<1x24xf32>
    %cst_10 = arith.constant dense<0.000000e+00> : vector<64x24xf32>
    %10 = tpu.matmul %7, %8, %cst_10 {dimension_numbers = #tpu.dot_dimension_numbers<[1], [0], [0], [1], [0, 0, 1, 1], [], []>} : vector<64x32xf32>, vector<32x24xf32>, vector<64x24xf32> -> vector<64x24xf32>
    %11 = vector.broadcast %9 : vector<1x24xf32> to vector<64x24xf32>
    %12 = arith.addf %10, %11 : vector<64x24xf32>
    %cst_11 = arith.constant 0.000000e+00 : f32
    %13 = vector.broadcast %cst_11 : f32 to vector<64x24xf32>
    %14 = arith.maximumf %12, %13 : vector<64x24xf32>
    %c0_12 = arith.constant 0 : index
    %c0_13 = arith.constant 0 : index
    %15 = vector.load %arg6[%c0_12, %c0_13] : memref<24x1xf32, #tpu.memory_space<vmem>>, vector<24x1xf32>
    %c0_14 = arith.constant 0 : index
    %c0_15 = arith.constant 0 : index
    %16 = vector.load %arg7[%c0_14, %c0_15] : memref<1x1xf32, #tpu.memory_space<vmem>>, vector<1x1xf32>
    %cst_16 = arith.constant dense<0.000000e+00> : vector<64x1xf32>
    %17 = tpu.matmul %14, %15, %cst_16 {dimension_numbers = #tpu.dot_dimension_numbers<[1], [0], [0], [1], [0, 0, 1, 1], [], []>} : vector<64x24xf32>, vector<24x1xf32>, vector<64x1xf32> -> vector<64x1xf32>
    %18 = vector.broadcast %16 : vector<1x1xf32> to vector<64x1xf32>
    %19 = arith.addf %17, %18 : vector<64x1xf32>
    %c0_17 = arith.constant 0 : index
    %c0_18 = arith.constant 0 : index
    %20 = vector.load %arg8[%c0_17, %c0_18] : memref<64x1xf32, #tpu.memory_space<vmem>>, vector<64x1xf32>
    tpu.vector_store %arg8[%c0_17, %c0_18], %19 {strides = array<i32>} : memref<64x1xf32, #tpu.memory_space<vmem>>, vector<64x1xf32>,
    return
  }
  func.func @transform_0(%arg0: i32) -> (i32, i32) {
    %c0_i32 = arith.constant 0 : i32
    %c0_i32_0 = arith.constant 0 : i32
    return %arg0, %c0_i32 : i32, i32
  }
  func.func @transform_1(%arg0: i32) -> (i32, i32) {
    %c0_i32 = arith.constant 0 : i32
    %c0_i32_0 = arith.constant 0 : i32
    %c0_i32_1 = arith.constant 0 : i32
    return %c0_i32, %c0_i32_0 : i32, i32
  }
  func.func @transform_2(%arg0: i32) -> (i32, i32) {
    %c0_i32 = arith.constant 0 : i32
    %c0_i32_0 = arith.constant 0 : i32
    %c0_i32_1 = arith.constant 0 : i32
    return %c0_i32, %c0_i32_0 : i32, i32
  }
  func.func @transform_3(%arg0: i32) -> (i32, i32) {
    %c0_i32 = arith.constant 0 : i32
    %c0_i32_0 = arith.constant 0 : i32
    %c0_i32_1 = arith.constant 0 : i32
    return %c0_i32, %c0_i32_0 : i32, i32
  }
  func.func @transform_4(%arg0: i32) -> (i32, i32) {
    %c0_i32 = arith.constant 0 : i32
    %c0_i32_0 = arith.constant 0 : i32
    %c0_i32_1 = arith.constant 0 : i32
    return %c0_i32, %c0_i32_0 : i32, i32
  }
  func.func @transform_5(%arg0: i32) -> (i32, i32) {
    %c0_i32 = arith.constant 0 : i32
    %c0_i32_0 = arith.constant 0 : i32
    %c0_i32_1 = arith.constant 0 : i32
    return %c0_i32, %c0_i32_0 : i32, i32
  }
  func.func @transform_6(%arg0: i32) -> (i32, i32) {
    %c0_i32 = arith.constant 0 : i32
    %c0_i32_0 = arith.constant 0 : i32
    %c0_i32_1 = arith.constant 0 : i32
    return %c0_i32, %c0_i32_0 : i32, i32
  }
  func.func @transform_7(%arg0: i32) -> (i32, i32) {
    %c0_i32 = arith.constant 0 : i32
    %c0_i32_0 = arith.constant 0 : i32
    return %arg0, %c0_i32 : i32, i32
  }
}

</mosaic_0001>

<llo_original>
// kernel: tpu_custom_call.1
$region0: #{tpu_custom_call.1}
  #allocation0 [shape = 'u32[]', space=smem, size = 0x4, offset = 0x4, fixed_abs, tag = 'smem constant byte address 0x4 - core index']
  #allocation1 [shape = 'u32[144,128]{1,0:T(1,128)}', space=vmem, size = 0x12000, scoped, tag = 'internal scratch']
  #allocation2 [shape = 'f32[1,1]{1,0:T(1,128)S(1)}', space=vmem, size = 0x200, scoped, tag = 'scoped memory for tpu_custom_call.1']
  %s0 = inlined_call_operand.vmem [shape: f32[128,16], index: 0, kind: input, shape index: {}]
  %s1 = inlined_call_operand.vmem [shape: f32[16,32], index: 1, kind: input, shape index: {}]
  %s2 = inlined_call_operand.vmem [shape: f32[1,32], index: 2, kind: input, shape index: {}]
  %s3 = inlined_call_operand.vmem [shape: f32[32,24], index: 3, kind: input, shape index: {}]
  %s4 = inlined_call_operand.vmem [shape: f32[1,24], index: 4, kind: input, shape index: {}]
  %s5 = inlined_call_operand.vmem [shape: f32[24,1], index: 5, kind: input, shape index: {}]
  %s6 = inlined_call_operand.<no memory space> [shape: f32[1,1], index: 6, kind: input, shape index: {}]
  %s7 = inlined_call_operand.vmem [shape: f32[128,1], index: 7, kind: output, shape index: {}]
  %s8 = sld [smem:[#allocation0]]
  $region61: #{tpu_custom_call.1} parent=0
    _
  %s10 = ssub.s32 1, %s8
  %s11 = scalar_select 0, %s10, %s8
  %v12 = vstv %s6
  %13 = vst [vmem:[#allocation2] sm:$0x1] %v12
  loop: start=0, step=1, limit=4
  $region2: #{tpu_custom_call.1} parent=0 // loop_pre_header
    _
  $region3: #{tpu_custom_call.1} parent=0 // loop_header
    %s15 = sphi 0, %s19
    %p16 = scmp.ge.s32.totalorder %s15, 4
    %s25 = sphi 0, %s27
    %s28 = sphi 0, %s25
    %s29 = sphi 0, %s28
    %s45 = sphi 0, %s29
    %s49 = sphi 0, %s49
    %s51 = sphi 0, %s49
    %s52 = sphi 0, %s51
    %s66 = sphi 0, %s52
    %s70 = sphi 0, %s70
    %s72 = sphi 0, %s70
    %s73 = sphi 0, %s72
    %s87 = sphi 0, %s73
    %s91 = sphi 0, %s91
    %s93 = sphi 0, %s91
    %s94 = sphi 0, %s93
    %s108 = sphi 0, %s94
    %s112 = sphi 0, %s112
    %s114 = sphi 0, %s112
    %s115 = sphi 0, %s114
    %s129 = sphi 0, %s115
    %s133 = sphi 0, %s133
    %s135 = sphi 0, %s133
    %s136 = sphi 0, %s135
    %s150 = sphi 0, %s136
    %s154 = sphi 0, %s154
    %s156 = sphi 0, %s154
    %s157 = sphi 0, %s156
    %s171 = sphi 0, %s157
    %s177 = sphi 0, %s179
    %s180 = sphi 0, %s177
    %s181 = sphi 0, %s180
    %s197 = sphi 0, %s181
  $region4: #{tpu_custom_call.1} parent=0 // loop_header_branch
    %18 = sbr.rel (%p16) target = $region8
  $region5: #{tpu_custom_call.1} parent=0 // loop_body
    %s20 = ssub.s32 %s15, 1
    %s21 = ssub.s32 %s15, 2
    %s22 = sadd.s32 %s15, 1
    %s23 = ssub.s32 %s15, %s22
    %p24 = scmp.eq.s32.totalorder %s23, 0
    %s26 = sadd.s32 %s25, 1
    %s27 = scalar_select %p24, %s25, %s26
    %p30 = pneg %p24
    %p31 = scmp.eq.s32.totalorder %s15, 1
    %p32 = por %p30, %p31
    %p33 = scmp.ne.s32.totalorder %s25, %s28
    %p34 = scmp.eq.s32.totalorder %s15, 0
    %p35 = por %p33, %p34
    %p36 = scmp.ne.s32.totalorder %s25, %s28
    %p37 = scmp.eq.s32.totalorder %s20, 1
    %p38 = por %p36, %p37
    %p39 = scmp.ne.s32.totalorder %s28, %s29
    %p40 = scmp.eq.s32.totalorder %s20, 0
    %p41 = por %p39, %p40
    %p42 = scmp.ne.s32.totalorder %s28, %s29
    %p43 = scmp.eq.s32.totalorder %s21, 1
    %p44 = por %p42, %p43
    %p46 = scmp.ne.s32.totalorder %s29, %s45
    %p47 = scmp.eq.s32.totalorder %s21, 0
    %p48 = por %p46, %p47
    %s50 = sadd.s32 %s49, 1
    %p53 = scmp.eq.s32.totalorder %s15, 1
    %p54 = scmp.ne.s32.totalorder %s49, %s51
    %p55 = scmp.eq.s32.totalorder %s15, 0
    %p56 = por %p54, %p55
    %p57 = scmp.ne.s32.totalorder %s49, %s51
    %p58 = scmp.eq.s32.totalorder %s20, 1
    %p59 = por %p57, %p58
    %p60 = scmp.ne.s32.totalorder %s51, %s52
    %p61 = scmp.eq.s32.totalorder %s20, 0
    %p62 = por %p60, %p61
    %p63 = scmp.ne.s32.totalorder %s51, %s52
    %p64 = scmp.eq.s32.totalorder %s21, 1
    %p65 = por %p63, %p64
    %p67 = scmp.ne.s32.totalorder %s52, %s66
    %p68 = scmp.eq.s32.totalorder %s21, 0
    %p69 = por %p67, %p68
    %s71 = sadd.s32 %s70, 1
    %p74 = scmp.eq.s32.totalorder %s15, 1
    %p75 = scmp.ne.s32.totalorder %s70, %s72
    %p76 = scmp.eq.s32.totalorder %s15, 0
    %p77 = por %p75, %p76
    %p78 = scmp.ne.s32.totalorder %s70, %s72
    %p79 = scmp.eq.s32.totalorder %s20, 1
    %p80 = por %p78, %p79
    %p81 = scmp.ne.s32.totalorder %s72, %s73
    %p82 = scmp.eq.s32.totalorder %s20, 0
    %p83 = por %p81, %p82
    %p84 = scmp.ne.s32.totalorder %s72, %s73
    %p85 = scmp.eq.s32.totalorder %s21, 1
    %p86 = por %p84, %p85
    %p88 = scmp.ne.s32.totalorder %s73, %s87
    %p89 = scmp.eq.s32.totalorder %s21, 0
    %p90 = por %p88, %p89
    %s92 = sadd.s32 %s91, 1
    %p95 = scmp.eq.s32.totalorder %s15, 1
    %p96 = scmp.ne.s32.totalorder %s91, %s93
    %p97 = scmp.eq.s32.totalorder %s15, 0
    %p98 = por %p96, %p97
    %p99 = scmp.ne.s32.totalorder %s91, %s93
    %p100 = scmp.eq.s32.totalorder %s20, 1
    %p101 = por %p99, %p100
    %p102 = scmp.ne.s32.totalorder %s93, %s94
    %p103 = scmp.eq.s32.totalorder %s20, 0
    %p104 = por %p102, %p103
    %p105 = scmp.ne.s32.totalorder %s93, %s94
    %p106 = scmp.eq.s32.totalorder %s21, 1
    %p107 = por %p105, %p106
    %p109 = scmp.ne.s32.totalorder %s94, %s108
    %p110 = scmp.eq.s32.totalorder %s21, 0
    %p111 = por %p109, %p110
    %s113 = sadd.s32 %s112, 1
    %p116 = scmp.eq.s32.totalorder %s15, 1
    %p117 = scmp.ne.s32.totalorder %s112, %s114
    %p118 = scmp.eq.s32.totalorder %s15, 0
    %p119 = por %p117, %p118
    %p120 = scmp.ne.s32.totalorder %s112, %s114
    %p121 = scmp.eq.s32.totalorder %s20, 1
    %p122 = por %p120, %p121
    %p123 = scmp.ne.s32.totalorder %s114, %s115
    %p124 = scmp.eq.s32.totalorder %s20, 0
    %p125 = por %p123, %p124
    %p126 = scmp.ne.s32.totalorder %s114, %s115
    %p127 = scmp.eq.s32.totalorder %s21, 1
    %p128 = por %p126, %p127
    %p130 = scmp.ne.s32.totalorder %s115, %s129
    %p131 = scmp.eq.s32.totalorder %s21, 0
    %p132 = por %p130, %p131
    %s134 = sadd.s32 %s133, 1
    %p137 = scmp.eq.s32.totalorder %s15, 1
    %p138 = scmp.ne.s32.totalorder %s133, %s135
    %p139 = scmp.eq.s32.totalorder %s15, 0
    %p140 = por %p138, %p139
    %p141 = scmp.ne.s32.totalorder %s133, %s135
    %p142 = scmp.eq.s32.totalorder %s20, 1
    %p143 = por %p141, %p142
    %p144 = scmp.ne.s32.totalorder %s135, %s136
    %p145 = scmp.eq.s32.totalorder %s20, 0
    %p146 = por %p144, %p145
    %p147 = scmp.ne.s32.totalorder %s135, %s136
    %p148 = scmp.eq.s32.totalorder %s21, 1
    %p149 = por %p147, %p148
    %p151 = scmp.ne.s32.totalorder %s136, %s150
    %p152 = scmp.eq.s32.totalorder %s21, 0
    %p153 = por %p151, %p152
    %s155 = sadd.s32 %s154, 1
    %p158 = scmp.eq.s32.totalorder %s15, 1
    %p159 = scmp.ne.s32.totalorder %s154, %s156
    %p160 = scmp.eq.s32.totalorder %s15, 0
    %p161 = por %p159, %p160
    %p162 = scmp.ne.s32.totalorder %s154, %s156
    %p163 = scmp.eq.s32.totalorder %s20, 1
    %p164 = por %p162, %p163
    %p165 = scmp.ne.s32.totalorder %s156, %s157
    %p166 = scmp.eq.s32.totalorder %s20, 0
    %p167 = por %p165, %p166
    %p168 = scmp.ne.s32.totalorder %s156, %s157
    %p169 = scmp.eq.s32.totalorder %s21, 1
    %p170 = por %p168, %p169
    %p172 = scmp.ne.s32.totalorder %s157, %s171
    %p173 = scmp.eq.s32.totalorder %s21, 0
    %p174 = por %p172, %p173
    %s175 = ssub.s32 %s15, %s22
    %p176 = scmp.eq.s32.totalorder %s175, 0
    %s178 = sadd.s32 %s177, 1
    %s179 = scalar_select %p176, %s177, %s178
    %p182 = pneg %p176
    %p183 = scmp.eq.s32.totalorder %s15, 1
    %p184 = por %p182, %p183
    %p185 = scmp.ne.s32.totalorder %s177, %s180
    %p186 = scmp.eq.s32.totalorder %s15, 0
    %p187 = por %p185, %p186
    %p188 = scmp.ne.s32.totalorder %s177, %s180
    %p189 = scmp.eq.s32.totalorder %s20, 1
    %p190 = por %p188, %p189
    %p191 = scmp.ne.s32.totalorder %s180, %s181
    %p192 = scmp.eq.s32.totalorder %s20, 0
    %p193 = por %p191, %p192
    %p194 = scmp.ne.s32.totalorder %s180, %s181
    %p195 = scmp.eq.s32.totalorder %s21, 1
    %p196 = por %p194, %p195
    %p198 = scmp.ne.s32.totalorder %s181, %s197
    %p199 = scmp.eq.s32.totalorder %s21, 0
    %p200 = por %p198, %p199
    %p201 = scmp.le.s32.totalorder 1, %s15
    %p202 = scmp.lt.s32.totalorder %s15, 3
    %p203 = pnand %p201, %p202
    %p204 = pneg %p203
    // Predicated region
    $region9: #{tpu_custom_call.1} parent=5 // pred_check
      _
    $region10: #{tpu_custom_call.1} parent=5 // pred_check_branch
      %206 = sbr.rel (%p203) target = $region12
    $region11: #{tpu_custom_call.1} parent=5 // pred_region
      %s207 = ssub.s32 %s15, 1
      // Predicated region
      $region13: #{tpu_custom_call.1} parent=11 // pred_check
        %p208 = pneg %p62
      $region14: #{tpu_custom_call.1} parent=11 // pred_check_branch
        %210 = sbr.rel (%p208) target = $region16
      $region15: #{tpu_custom_call.1} parent=11 // pred_region
        _
      $region16: #{tpu_custom_call.1} parent=11 // pred_fallthru
        _
      // Predicated region
      $region17: #{tpu_custom_call.1} parent=11 // pred_check
        %p211 = pneg %p83
      $region18: #{tpu_custom_call.1} parent=11 // pred_check_branch
        %213 = sbr.rel (%p211) target = $region20
      $region19: #{tpu_custom_call.1} parent=11 // pred_region
        _
      $region20: #{tpu_custom_call.1} parent=11 // pred_fallthru
        _
      // Predicated region
      $region21: #{tpu_custom_call.1} parent=11 // pred_check
        %p214 = pneg %p104
      $region22: #{tpu_custom_call.1} parent=11 // pred_check_branch
        %216 = sbr.rel (%p214) target = $region24
      $region23: #{tpu_custom_call.1} parent=11 // pred_region
        _
      $region24: #{tpu_custom_call.1} parent=11 // pred_fallthru
        _
      // Predicated region
      $region25: #{tpu_custom_call.1} parent=11 // pred_check
        %p217 = pneg %p125
      $region26: #{tpu_custom_call.1} parent=11 // pred_check_branch
        %219 = sbr.rel (%p217) target = $region28
      $region27: #{tpu_custom_call.1} parent=11 // pred_region
        _
      $region28: #{tpu_custom_call.1} parent=11 // pred_fallthru
        _
      // Predicated region
      $region29: #{tpu_custom_call.1} parent=11 // pred_check
        %p220 = pneg %p146
      $region30: #{tpu_custom_call.1} parent=11 // pred_check_branch
        %222 = sbr.rel (%p220) target = $region32
      $region31: #{tpu_custom_call.1} parent=11 // pred_region
        _
      $region32: #{tpu_custom_call.1} parent=11 // pred_fallthru
        _
      // Predicated region
      $region33: #{tpu_custom_call.1} parent=11 // pred_check
        %p223 = pneg %p167
      $region34: #{tpu_custom_call.1} parent=11 // pred_check_branch
        %225 = sbr.rel (%p223) target = $region36
      $region35: #{tpu_custom_call.1} parent=11 // pred_region
        _
      $region36: #{tpu_custom_call.1} parent=11 // pred_fallthru
        _
    $region12: #{tpu_custom_call.1} parent=5 // pred_fallthru
      _
    %p226 = scmp.lt.s32.totalorder %s15, 2
    // Predicated region
    $region37: #{tpu_custom_call.1} parent=5 // pred_check
      %p227 = pneg %p226
    $region38: #{tpu_custom_call.1} parent=5 // pred_check_branch
      %229 = sbr.rel (%p227) target = $region40
    $region39: #{tpu_custom_call.1} parent=5 // pred_region
      // Predicated region
      $region41: #{tpu_custom_call.1} parent=39 // pred_check
        %p230 = pneg %p35
      $region42: #{tpu_custom_call.1} parent=39 // pred_check_branch
        %232 = sbr.rel (%p230) target = $region44
      $region43: #{tpu_custom_call.1} parent=39 // pred_region
        %s233 = smul.u32 8, %s15
        %p234 = scmp.lt.s32.totalorder %s233, 15
        %s235 = scalar_select %p234, %s233, 15
        %s236 = smul.addr %s235, 8
        %s237 = scalar_lea.vmem %s0, %s236
        %s238 = smul.u32 8, %s15
      $region44: #{tpu_custom_call.1} parent=39 // pred_fallthru
        _
    $region40: #{tpu_custom_call.1} parent=5 // pred_fallthru
      _
    %p239 = scmp.le.s32.totalorder 1, %s15
    %p240 = scmp.lt.s32.totalorder %s15, 3
    %p241 = pnand %p239, %p240
    %p242 = pneg %p241
    // Predicated region
    $region45: #{tpu_custom_call.1} parent=5 // pred_check
      _
    $region46: #{tpu_custom_call.1} parent=5 // pred_check_branch
      %244 = sbr.rel (%p241) target = $region48
    $region47: #{tpu_custom_call.1} parent=5 // pred_region
      %s245 = ssub.s32 %s15, 1
      %s246 = smul.u32 8, %s20
      %p247 = scmp.lt.s32.totalorder %s246, 15
      %s248 = scalar_select %p247, %s246, 15
      %s249 = smul.addr %s248, 8
      %s250 = scalar_lea.vmem %s0, %s249
      %p251 = pneg %p41
      %p252 = pneg %p38
      %p253 = pneg %p62
      %p254 = pneg %p59
      %p255 = pneg %p83
      %p256 = pneg %p80
      %p257 = pneg %p104
      %p258 = pneg %p101
      %p259 = pneg %p125
      %p260 = pneg %p122
      %p261 = pneg %p146
      %p262 = pneg %p143
      %p263 = pneg %p167
      %p264 = pneg %p164
      %p265 = pneg %p193
      %p266 = pneg %p190
      %s267 = smul.u32 8, %s20
      %p268 = scmp.lt.s32.totalorder %s267, 15
      %s269 = scalar_select %p268, %s267, 15
      %s270 = smul.addr %s269, 8
      %s271 = scalar_lea.vmem %s7, %s270
      %s272 = smul.u32 8, %s20
      %p273 = scmp.lt.s32.totalorder %s272, 15
      %s274 = scalar_select %p273, %s272, 15
      %s275 = smul.addr %s274, 8
      %s276 = scalar_lea.vmem %s0, %s275
      %s277 = smul.u32 8, %s20
      %s278 = smul.u32 8, %s20
      %p279 = scmp.lt.s32.totalorder %s278, 15
      %s280 = scalar_select %p279, %s278, 15
      %s281 = smul.addr %s280, 8
      %s282 = scalar_lea.vmem %s7, %s281
      %s283 = smul.u32 8, %s20
      %v284 = vld [vmem:[%s276] sm:$0xff]
      %v285 = vld [vmem:[%s276 + $0x8] sm:$0xff]
      %v286 = vld [vmem:[%s276 + $0x10] sm:$0xff]
      %v287 = vld [vmem:[%s276 + $0x18] sm:$0xff]
      %v288 = vld [vmem:[%s276 + $0x20] sm:$0xff]
      %v289 = vld [vmem:[%s276 + $0x28] sm:$0xff]
      %v290 = vld [vmem:[%s276 + $0x30] sm:$0xff]
      %v291 = vld [vmem:[%s276 + $0x38] sm:$0xff]
      %v292 = vld [vmem:[%s1] sm:$0xff]
      %v293 = vld [vmem:[%s1 + $0x8] sm:$0xff]
      %v294 = vld [vmem:[%s2] sm:$0x1]
      %v296 = vlaneseq
      %v297 = vshrl.u32 %v296, 7
      %v298 = vsub.s32 0, %v297
      %v299 = vrot.slane %v294, %v298
      %vm301 = vcmask 130048
      %v303 = vsel %vm301, %v284, 0
      %v306 = vsel %vm301, %v285, 0
      %v309 = vsel %vm301, %v286, 0
      %v312 = vsel %vm301, %v287, 0
      %v315 = vsel %vm301, %v288, 0
      %v318 = vsel %vm301, %v289, 0
      %v321 = vsel %vm301, %v290, 0
      %v324 = vsel %vm301, %v291, 0
      %326 = vmatprep.subr.mxu0 0.0
      %327 = vmatpush1.msra.mxu0 %v292
      %328 = vmatprep.subr.mxu0 0.0
      %329 = vmatpush1.msra.mxu0 %v293
      %330 = vmatprep.subr.mxu0 0.0
      %331 = vmatpush1.msra.mxu0 0.0
      %332 = vmatprep.subr.mxu0 0.0
      %333 = vmatpush1.msra.mxu0 0.0
      %334 = vmatprep.subr.mxu0 0.0
      %335 = vmatpush1.msra.mxu0 0.0
      %336 = vmatprep.subr.mxu0 0.0
      %337 = vmatpush1.msra.mxu0 0.0
      %338 = vmatprep.subr.mxu0 0.0
      %339 = vmatpush1.msra.mxu0 0.0
      %340 = vmatprep.subr.mxu0 0.0
      %341 = vmatpush1.msra.mxu0 0.0
      %342 = vmatprep.subr.mxu0 0.0
      %343 = vmatpush1.msra.mxu0 0.0
      %344 = vmatprep.subr.mxu0 0.0
      %345 = vmatpush1.msra.mxu0 0.0
      %346 = vmatprep.subr.mxu0 0.0
      %347 = vmatpush1.msra.mxu0 0.0
      %348 = vmatprep.subr.mxu0 0.0
      %349 = vmatpush1.msra.mxu0 0.0
      %350 = vmatprep.subr.mxu0 0.0
      %351 = vmatpush1.msra.mxu0 0.0
      %352 = vmatprep.subr.mxu0 0.0
      %353 = vmatpush1.msra.mxu0 0.0
      %354 = vmatprep.subr.mxu0 0.0
      %355 = vmatpush1.msra.mxu0 0.0
      %356 = vmatprep.subr.mxu0 0.0
      %357 = vmatpush1.msra.mxu0 0.0
      %358 = vmatprep.subr.mxu0 0.0
      %359 = vmatpush1.msra.mxu0 0.0
      %360 = vmatprep.subr.mxu0 0.0
      %361 = vmatpush1.msra.mxu0 0.0
      %362 = vmatprep.subr.mxu0 0.0
      %363 = vmatpush1.msra.mxu0 0.0
      %364 = vmatprep.subr.mxu0 0.0
      %365 = vmatpush1.msra.mxu0 0.0
      %366 = vmatprep.subr.mxu0 0.0
      %367 = vmatpush1.msra.mxu0 0.0
      %368 = vmatprep.subr.mxu0 0.0
      %369 = vmatpush1.msra.mxu0 0.0
      %370 = vmatprep.subr.mxu0 0.0
      %371 = vmatpush1.msra.mxu0 0.0
      %372 = vmatprep.subr.mxu0 0.0
      %373 = vmatpush1.msra.mxu0 0.0
      %374 = vmatprep.subr.mxu0 0.0
      %375 = vmatpush1.msra.mxu0 0.0
      %376 = vmatprep.subr.mxu0 0.0
      %377 = vmatpush1.msra.mxu0 0.0
      %378 = vmatprep.subr.mxu0 0.0
      %379 = vmatpush1.msra.mxu0 0.0
      %380 = vmatprep.subr.mxu0 0.0
      %381 = vmatpush1.msra.mxu0 0.0
      %382 = vmatprep.subr.mxu0 0.0
      %383 = vmatpush1.msra.mxu0 0.0
      %384 = vmatprep.subr.mxu0 0.0
      %385 = vmatpush1.msra.mxu0 0.0
      %386 = vmatprep.subr.mxu0 0.0
      %387 = vmatpush1.msra.mxu0 0.0
      %388 = vmatprep.subr.mxu0 0.0
      %389 = vmatpush1.msra.mxu0 0.0
      %390 = vmatprep.mubr.f32.mxu0 0.0
      %391 = vmatmul.mubr.f32.gmra.mrb[0].mxu0 %v303
      %v392 = vpop.f32.mrb[0].mxu0
      %v393 = vadd.f32 %v299, %v392
      %v394 = vpop.f32.mrb[0].mxu0
      %395 = vmatprep.mubr.f32.mxu0 0.0
      %396 = vmatmul.mubr.f32.gmra.mrb[0].mxu0 %v306
      %v397 = vpop.f32.mrb[0].mxu0
      %v398 = vadd.f32 %v299, %v397
      %v399 = vpop.f32.mrb[0].mxu0
      %400 = vmatprep.mubr.f32.mxu0 0.0
      %401 = vmatmul.mubr.f32.gmra.mrb[0].mxu0 %v309
      %v402 = vpop.f32.mrb[0].mxu0
      %v403 = vadd.f32 %v299, %v402
      %v404 = vpop.f32.mrb[0].mxu0
      %405 = vmatprep.mubr.f32.mxu0 0.0
      %406 = vmatmul.mubr.f32.gmra.mrb[0].mxu0 %v312
      %v407 = vpop.f32.mrb[0].mxu0
      %v408 = vadd.f32 %v299, %v407
      %v409 = vpop.f32.mrb[0].mxu0
      %410 = vmatprep.mubr.f32.mxu0 0.0
      %411 = vmatmul.mubr.f32.gmra.mrb[0].mxu0 %v315
      %v412 = vpop.f32.mrb[0].mxu0
      %v413 = vadd.f32 %v299, %v412
      %v414 = vpop.f32.mrb[0].mxu0
      %415 = vmatprep.mubr.f32.mxu0 0.0
      %416 = vmatmul.mubr.f32.gmra.mrb[0].mxu0 %v318
      %v417 = vpop.f32.mrb[0].mxu0
      %v418 = vadd.f32 %v299, %v417
      %v419 = vpop.f32.mrb[0].mxu0
      %420 = vmatprep.mubr.f32.mxu0 0.0
      %421 = vmatmul.mubr.f32.gmra.mrb[0].mxu0 %v321
      %v422 = vpop.f32.mrb[0].mxu0
      %v423 = vadd.f32 %v299, %v422
      %v424 = vpop.f32.mrb[0].mxu0
      %425 = vmatprep.mubr.f32.mxu0 0.0
      %426 = vmatmul.mubr.f32.gmra.mrb[0].mxu0 %v324
      %v427 = vpop.f32.mrb[0].mxu0
      %v428 = vadd.f32 %v299, %v427
      %v429 = vpop.f32.mrb[0].mxu0
      %430 = vdwg.mxu0
      %v431 = vmax.f32 %v393, 0.0
      %v432 = vmax.f32 %v398, 0.0
      %v433 = vmax.f32 %v403, 0.0
      %v434 = vmax.f32 %v408, 0.0
      %v435 = vmax.f32 %v413, 0.0
      %v436 = vmax.f32 %v418, 0.0
      %v437 = vmax.f32 %v423, 0.0
      %v438 = vmax.f32 %v428, 0.0
      %v439 = vld [vmem:[%s3] sm:$0xff]
      %v440 = vld [vmem:[%s3 + $0x8] sm:$0xff]
      %v441 = vld [vmem:[%s3 + $0x10] sm:$0xff]
      %v442 = vld [vmem:[%s3 + $0x18] sm:$0xff]
      %v443 = vld [vmem:[%s4] sm:$0x1]
      %v445 = vlaneseq
      %v446 = vshrl.u32 %v445, 7
      %v447 = vsub.s32 0, %v446
      %v448 = vrot.slane %v443, %v447
      %vm450 = vcmask 261120
      %v452 = vsel %vm450, %v431, 0
      %v455 = vsel %vm450, %v432, 0
      %v458 = vsel %vm450, %v433, 0
      %v461 = vsel %vm450, %v434, 0
      %v464 = vsel %vm450, %v435, 0
      %v467 = vsel %vm450, %v436, 0
      %v470 = vsel %vm450, %v437, 0
      %v473 = vsel %vm450, %v438, 0
      %475 = vmatprep.subr.mxu0 0.0
      %476 = vmatpush1.msra.mxu0 %v439
      %477 = vmatprep.subr.mxu0 0.0
      %478 = vmatpush1.msra.mxu0 %v440
      %479 = vmatprep.subr.mxu0 0.0
      %480 = vmatpush1.msra.mxu0 %v441
      %481 = vmatprep.subr.mxu0 0.0
      %482 = vmatpush1.msra.mxu0 %v442
      %483 = vmatprep.subr.mxu0 0.0
      %484 = vmatpush1.msra.mxu0 0.0
      %485 = vmatprep.subr.mxu0 0.0
      %486 = vmatpush1.msra.mxu0 0.0
      %487 = vmatprep.subr.mxu0 0.0
      %488 = vmatpush1.msra.mxu0 0.0
      %489 = vmatprep.subr.mxu0 0.0
      %490 = vmatpush1.msra.mxu0 0.0
      %491 = vmatprep.subr.mxu0 0.0
      %492 = vmatpush1.msra.mxu0 0.0
      %493 = vmatprep.subr.mxu0 0.0
      %494 = vmatpush1.msra.mxu0 0.0
      %495 = vmatprep.subr.mxu0 0.0
      %496 = vmatpush1.msra.mxu0 0.0
      %497 = vmatprep.subr.mxu0 0.0
      %498 = vmatpush1.msra.mxu0 0.0
      %499 = vmatprep.subr.mxu0 0.0
      %500 = vmatpush1.msra.mxu0 0.0
      %501 = vmatprep.subr.mxu0 0.0
      %502 = vmatpush1.msra.mxu0 0.0
      %503 = vmatprep.subr.mxu0 0.0
      %504 = vmatpush1.msra.mxu0 0.0
      %505 = vmatprep.subr.mxu0 0.0
      %506 = vmatpush1.msra.mxu0 0.0
      %507 = vmatprep.subr.mxu0 0.0
      %508 = vmatpush1.msra.mxu0 0.0
      %509 = vmatprep.subr.mxu0 0.0
      %510 = vmatpush1.msra.mxu0 0.0
      %511 = vmatprep.subr.mxu0 0.0
      %512 = vmatpush1.msra.mxu0 0.0
      %513 = vmatprep.subr.mxu0 0.0
      %514 = vmatpush1.msra.mxu0 0.0
      %515 = vmatprep.subr.mxu0 0.0
      %516 = vmatpush1.msra.mxu0 0.0
      %517 = vmatprep.subr.mxu0 0.0
      %518 = vmatpush1.msra.mxu0 0.0
      %519 = vmatprep.subr.mxu0 0.0
      %520 = vmatpush1.msra.mxu0 0.0
      %521 = vmatprep.subr.mxu0 0.0
      %522 = vmatpush1.msra.mxu0 0.0
      %523 = vmatprep.subr.mxu0 0.0
      %524 = vmatpush1.msra.mxu0 0.0
      %525 = vmatprep.subr.mxu0 0.0
      %526 = vmatpush1.msra.mxu0 0.0
      %527 = vmatprep.subr.mxu0 0.0
      %528 = vmatpush1.msra.mxu0 0.0
      %529 = vmatprep.subr.mxu0 0.0
      %530 = vmatpush1.msra.mxu0 0.0
      %531 = vmatprep.subr.mxu0 0.0
      %532 = vmatpush1.msra.mxu0 0.0
      %533 = vmatprep.subr.mxu0 0.0
      %534 = vmatpush1.msra.mxu0 0.0
      %535 = vmatprep.subr.mxu0 0.0
      %536 = vmatpush1.msra.mxu0 0.0
      %537 = vmatprep.subr.mxu0 0.0
      %538 = vmatpush1.msra.mxu0 0.0
      %539 = vmatprep.mubr.f32.mxu0 0.0
      %540 = vmatmul.mubr.f32.gmra.mrb[0].mxu0 %v452
      %v541 = vpop.f32.mrb[0].mxu0
      %v542 = vadd.f32 %v448, %v541
      %v543 = vpop.f32.mrb[0].mxu0
      %544 = vmatprep.mubr.f32.mxu0 0.0
      %545 = vmatmul.mubr.f32.gmra.mrb[0].mxu0 %v455
      %v546 = vpop.f32.mrb[0].mxu0
      %v547 = vadd.f32 %v448, %v546
      %v548 = vpop.f32.mrb[0].mxu0
      %549 = vmatprep.mubr.f32.mxu0 0.0
      %550 = vmatmul.mubr.f32.gmra.mrb[0].mxu0 %v458
      %v551 = vpop.f32.mrb[0].mxu0
      %v552 = vadd.f32 %v448, %v551
      %v553 = vpop.f32.mrb[0].mxu0
      %554 = vmatprep.mubr.f32.mxu0 0.0
      %555 = vmatmul.mubr.f32.gmra.mrb[0].mxu0 %v461
      %v556 = vpop.f32.mrb[0].mxu0
      %v557 = vadd.f32 %v448, %v556
      %v558 = vpop.f32.mrb[0].mxu0
      %559 = vmatprep.mubr.f32.mxu0 0.0
      %560 = vmatmul.mubr.f32.gmra.mrb[0].mxu0 %v464
      %v561 = vpop.f32.mrb[0].mxu0
      %v562 = vadd.f32 %v448, %v561
      %v563 = vpop.f32.mrb[0].mxu0
      %564 = vmatprep.mubr.f32.mxu0 0.0
      %565 = vmatmul.mubr.f32.gmra.mrb[0].mxu0 %v467
      %v566 = vpop.f32.mrb[0].mxu0
      %v567 = vadd.f32 %v448, %v566
      %v568 = vpop.f32.mrb[0].mxu0
      %569 = vmatprep.mubr.f32.mxu0 0.0
      %570 = vmatmul.mubr.f32.gmra.mrb[0].mxu0 %v470
      %v571 = vpop.f32.mrb[0].mxu0
      %v572 = vadd.f32 %v448, %v571
      %v573 = vpop.f32.mrb[0].mxu0
      %574 = vmatprep.mubr.f32.mxu0 0.0
      %575 = vmatmul.mubr.f32.gmra.mrb[0].mxu0 %v473
      %v576 = vpop.f32.mrb[0].mxu0
      %v577 = vadd.f32 %v448, %v576
      %v578 = vpop.f32.mrb[0].mxu0
      %579 = vdwg.mxu0
      %v580 = vmax.f32 %v542, 0.0
      %v581 = vmax.f32 %v547, 0.0
      %v582 = vmax.f32 %v552, 0.0
      %v583 = vmax.f32 %v557, 0.0
      %v584 = vmax.f32 %v562, 0.0
      %v585 = vmax.f32 %v567, 0.0
      %v586 = vmax.f32 %v572, 0.0
      %v587 = vmax.f32 %v577, 0.0
      %v588 = vld [vmem:[%s5] sm:$0xff]
      %v589 = vld [vmem:[%s5 + $0x8] sm:$0xff]
      %v590 = vld [vmem:[%s5 + $0x10] sm:$0xff]
      %v591 = vld [vmem:[#allocation2] sm:$0x1]
      %v593 = vlaneseq
      %v594 = vshrl.u32 %v593, 7
      %v595 = vsub.s32 0, %v594
      %v596 = vrot.slane %v591, %v595
      %vm598 = vcmask 195584
      %v600 = vsel %vm598, %v580, 0
      %v603 = vsel %vm598, %v581, 0
      %v606 = vsel %vm598, %v582, 0
      %v609 = vsel %vm598, %v583, 0
      %v612 = vsel %vm598, %v584, 0
      %v615 = vsel %vm598, %v585, 0
      %v618 = vsel %vm598, %v586, 0
      %v621 = vsel %vm598, %v587, 0
      %623 = vmatprep.subr.mxu0 0.0
      %624 = vmatpush1.msra.mxu0 %v588
      %625 = vmatprep.subr.mxu0 0.0
      %626 = vmatpush1.msra.mxu0 %v589
      %627 = vmatprep.subr.mxu0 0.0
      %628 = vmatpush1.msra.mxu0 %v590
      %629 = vmatprep.subr.mxu0 0.0
      %630 = vmatpush1.msra.mxu0 0.0
      %631 = vmatprep.subr.mxu0 0.0
      %632 = vmatpush1.msra.mxu0 0.0
      %633 = vmatprep.subr.mxu0 0.0
      %634 = vmatpush1.msra.mxu0 0.0
      %635 = vmatprep.subr.mxu0 0.0
      %636 = vmatpush1.msra.mxu0 0.0
      %637 = vmatprep.subr.mxu0 0.0
      %638 = vmatpush1.msra.mxu0 0.0
      %639 = vmatprep.subr.mxu0 0.0
      %640 = vmatpush1.msra.mxu0 0.0
      %641 = vmatprep.subr.mxu0 0.0
      %642 = vmatpush1.msra.mxu0 0.0
      %643 = vmatprep.subr.mxu0 0.0
      %644 = vmatpush1.msra.mxu0 0.0
      %645 = vmatprep.subr.mxu0 0.0
      %646 = vmatpush1.msra.mxu0 0.0
      %647 = vmatprep.subr.mxu0 0.0
      %648 = vmatpush1.msra.mxu0 0.0
      %649 = vmatprep.subr.mxu0 0.0
      %650 = vmatpush1.msra.mxu0 0.0
      %651 = vmatprep.subr.mxu0 0.0
      %652 = vmatpush1.msra.mxu0 0.0
      %653 = vmatprep.subr.mxu0 0.0
      %654 = vmatpush1.msra.mxu0 0.0
      %655 = vmatprep.subr.mxu0 0.0
      %656 = vmatpush1.msra.mxu0 0.0
      %657 = vmatprep.subr.mxu0 0.0
      %658 = vmatpush1.msra.mxu0 0.0
      %659 = vmatprep.subr.mxu0 0.0
      %660 = vmatpush1.msra.mxu0 0.0
      %661 = vmatprep.subr.mxu0 0.0
      %662 = vmatpush1.msra.mxu0 0.0
      %663 = vmatprep.subr.mxu0 0.0
      %664 = vmatpush1.msra.mxu0 0.0
      %665 = vmatprep.subr.mxu0 0.0
      %666 = vmatpush1.msra.mxu0 0.0
      %667 = vmatprep.subr.mxu0 0.0
      %668 = vmatpush1.msra.mxu0 0.0
      %669 = vmatprep.subr.mxu0 0.0
      %670 = vmatpush1.msra.mxu0 0.0
      %671 = vmatprep.subr.mxu0 0.0
      %672 = vmatpush1.msra.mxu0 0.0
      %673 = vmatprep.subr.mxu0 0.0
      %674 = vmatpush1.msra.mxu0 0.0
      %675 = vmatprep.subr.mxu0 0.0
      %676 = vmatpush1.msra.mxu0 0.0
      %677 = vmatprep.subr.mxu0 0.0
      %678 = vmatpush1.msra.mxu0 0.0
      %679 = vmatprep.subr.mxu0 0.0
      %680 = vmatpush1.msra.mxu0 0.0
      %681 = vmatprep.subr.mxu0 0.0
      %682 = vmatpush1.msra.mxu0 0.0
      %683 = vmatprep.subr.mxu0 0.0
      %684 = vmatpush1.msra.mxu0 0.0
      %685 = vmatprep.subr.mxu0 0.0
      %686 = vmatpush1.msra.mxu0 0.0
      %687 = vmatprep.mubr.f32.mxu0 0.0
      %688 = vmatmul.mubr.f32.gmra.mrb[0].mxu0 %v600
      %v689 = vpop.f32.mrb[0].mxu0
      %v690 = vadd.f32 %v596, %v689
      %v691 = vpop.f32.mrb[0].mxu0
      %692 = vmatprep.mubr.f32.mxu0 0.0
      %693 = vmatmul.mubr.f32.gmra.mrb[0].mxu0 %v603
      %v694 = vpop.f32.mrb[0].mxu0
      %v695 = vadd.f32 %v596, %v694
      %v696 = vpop.f32.mrb[0].mxu0
      %697 = vmatprep.mubr.f32.mxu0 0.0
      %698 = vmatmul.mubr.f32.gmra.mrb[0].mxu0 %v606
      %v699 = vpop.f32.mrb[0].mxu0
      %v700 = vadd.f32 %v596, %v699
      %v701 = vpop.f32.mrb[0].mxu0
      %702 = vmatprep.mubr.f32.mxu0 0.0
      %703 = vmatmul.mubr.f32.gmra.mrb[0].mxu0 %v609
      %v704 = vpop.f32.mrb[0].mxu0
      %v705 = vadd.f32 %v596, %v704
      %v706 = vpop.f32.mrb[0].mxu0
      %707 = vmatprep.mubr.f32.mxu0 0.0
      %708 = vmatmul.mubr.f32.gmra.mrb[0].mxu0 %v612
      %v709 = vpop.f32.mrb[0].mxu0
      %v710 = vadd.f32 %v596, %v709
      %v711 = vpop.f32.mrb[0].mxu0
      %712 = vmatprep.mubr.f32.mxu0 0.0
      %713 = vmatmul.mubr.f32.gmra.mrb[0].mxu0 %v615
      %v714 = vpop.f32.mrb[0].mxu0
      %v715 = vadd.f32 %v596, %v714
      %v716 = vpop.f32.mrb[0].mxu0
      %717 = vmatprep.mubr.f32.mxu0 0.0
      %718 = vmatmul.mubr.f32.gmra.mrb[0].mxu0 %v618
      %v719 = vpop.f32.mrb[0].mxu0
      %v720 = vadd.f32 %v596, %v719
      %v721 = vpop.f32.mrb[0].mxu0
      %722 = vmatprep.mubr.f32.mxu0 0.0
      %723 = vmatmul.mubr.f32.gmra.mrb[0].mxu0 %v621
      %v724 = vpop.f32.mrb[0].mxu0
      %v725 = vadd.f32 %v596, %v724
      %v726 = vpop.f32.mrb[0].mxu0
      %727 = vdwg.mxu0
      %vm728 = vcmask 7168
      %729 = vst.msk [vmem:[%s282] sm:$0xff] %vm728, %v690
      %730 = vst.msk [vmem:[%s282 + $0x8] sm:$0xff] %vm728, %v695
      %731 = vst.msk [vmem:[%s282 + $0x10] sm:$0xff] %vm728, %v700
      %732 = vst.msk [vmem:[%s282 + $0x18] sm:$0xff] %vm728, %v705
      %733 = vst.msk [vmem:[%s282 + $0x20] sm:$0xff] %vm728, %v710
      %734 = vst.msk [vmem:[%s282 + $0x28] sm:$0xff] %vm728, %v715
      %735 = vst.msk [vmem:[%s282 + $0x30] sm:$0xff] %vm728, %v720
      %736 = vst.msk [vmem:[%s282 + $0x38] sm:$0xff] %vm728, %v725
      %s737 = smul.u32 8, %s20
      %p738 = scmp.lt.s32.totalorder %s737, 15
      %s739 = scalar_select %p738, %s737, 15
      %s740 = smul.addr %s739, 8
      %s741 = scalar_lea.vmem %s7, %s740
      // Predicated region
      $region49: #{tpu_custom_call.1} parent=47 // pred_check
        %p742 = pneg %p190
      $region50: #{tpu_custom_call.1} parent=47 // pred_check_branch
        %744 = sbr.rel (%p742) target = $region52
      $region51: #{tpu_custom_call.1} parent=47 // pred_region
        %s745 = smul.u32 8, %s20
      $region52: #{tpu_custom_call.1} parent=47 // pred_fallthru
        _
    $region48: #{tpu_custom_call.1} parent=5 // pred_fallthru
      _
    %p746 = scmp.le.s32.totalorder 2, %s15
    // Predicated region
    $region53: #{tpu_custom_call.1} parent=5 // pred_check
      %p747 = pneg %p746
    $region54: #{tpu_custom_call.1} parent=5 // pred_check_branch
      %749 = sbr.rel (%p747) target = $region56
    $region55: #{tpu_custom_call.1} parent=5 // pred_region
      %s750 = ssub.s32 %s15, 2
      // Predicated region
      $region57: #{tpu_custom_call.1} parent=55 // pred_check
        %p751 = pneg %p196
      $region58: #{tpu_custom_call.1} parent=55 // pred_check_branch
        %753 = sbr.rel (%p751) target = $region60
      $region59: #{tpu_custom_call.1} parent=55 // pred_region
        %s754 = smul.u32 8, %s21
        %p755 = scmp.lt.s32.totalorder %s754, 15
        %s756 = scalar_select %p755, %s754, 15
        %s757 = smul.addr %s756, 8
        %s758 = scalar_lea.vmem %s7, %s757
      $region60: #{tpu_custom_call.1} parent=55 // pred_fallthru
        _
    $region56: #{tpu_custom_call.1} parent=5 // pred_fallthru
      _
  $region6: #{tpu_custom_call.1} parent=0 // loop_footer
    %s19 = sadd.s32 1, %s15
  $region7: #{tpu_custom_call.1} parent=0 // loop_footer_branch
    %14 = sbr.rel target = $region3
  $region8: #{tpu_custom_call.1} parent=0 // loop_exit
    _

</llo_original>
